<compile_context>
chip_gen: v7x
topology: tpu7x:2x2x1
jax: 0.10.0
libtpu: 0.0.40
codegen_flags: <defaults>
</compile_context>

<pallas_src>
import functools

import jax
import jax.numpy as jnp
from jax.experimental import pallas as pl
from jax.experimental.pallas import tpu as pltpu

NUM_GROUPS = 4
GN_EPS = 1e-5

_VMEM_BUDGET = 40 * 1024 * 1024   # conservative per-tile footprint target (fits v7x 64 MiB)
_VMEM_LIMIT = 48 * 1024 * 1024    # explicit scoped-VMEM limit for the pallas_call


def _diffusion_block_kernel(x_ref, e_ref, w1_ref, w2_ref, p_ref, o_ref, *,
                            use_gnorm, num_groups):
    """Fused Linear+Linear add, GroupNorm(num_groups), SiLU for one batch tile.

    x_ref : [TB, in_dim]     batch-tiled activations
    e_ref : [TB, embed_dim]  batch-tiled embedding activations
    w1_ref: [in_dim, C]      VMEM-resident weight (pre-transposed)
    w2_ref: [embed_dim, C]   VMEM-resident weight (pre-transposed)
    p_ref : [3, C]           row0 = b1+b2, row1 = gamma, row2 = beta
    o_ref : [TB, C]
    """
    # Two skinny GEMMs on the MXU, f32 accumulation (no operand upcast needed).
    h = jnp.dot(x_ref[...], w1_ref[...], preferred_element_type=jnp.float32)
    h = h + jnp.dot(e_ref[...], w2_ref[...], preferred_element_type=jnp.float32)

    p = p_ref[...].astype(jnp.float32)      # [3, C]
    h = h + p[0:1, :]                       # merged bias

    if use_gnorm:
        gamma = p[1:2, :]
        beta = p[2:3, :]
        C = h.shape[-1]
        gs = C // num_groups
        inv_gs = jnp.float32(1.0 / gs)
        lane = jax.lax.broadcasted_iota(jnp.int32, h.shape, 1)

        # Per-(sample, group) stats via full-width masked reductions.
        # Two-pass variance (mean of squared deviations) for numerical safety.
        m_full = jnp.zeros_like(h)          # per-channel mean map
        s_full = jnp.zeros_like(h)          # per-channel inv-std map
        for g in range(num_groups):         # unrolled (num_groups == 4)
            sel = (lane >= g * gs) & (lane < (g + 1) * gs)
            m = jnp.sum(jnp.where(sel, h, 0.0), axis=-1, keepdims=True) * inv_gs
            d = jnp.where(sel, h - m, 0.0)
            v = jnp.sum(d * d, axis=-1, keepdims=True) * inv_gs
            inv = jax.lax.rsqrt(v + GN_EPS)
            m_full = jnp.where(sel, m, m_full)
            s_full = jnp.where(sel, inv, s_full)

        # Single fused full-width pass: normalize + affine.
        h = (h - m_full) * (s_full * gamma) + beta

    # act = SiLU (x * sigmoid(x)); sigmoid goes to the EUP slot.
    h = h * jax.nn.sigmoid(h)
    o_ref[...] = h.astype(o_ref.dtype)


def diffusion_block(x, emb, params, *, use_gnorm=True, tile_b=512):
    """x: [B, in_dim], emb: [B, embed_dim] -> [B, out_dim].

    params = (w1, b1, w2, b2, gamma, beta); linear weights stored as
    [in_features, out_features] (pre-transposed from PyTorch layout).
    """
    w1, b1, w2, b2, gamma, beta = params
    B, in_dim = x.shape
    embed_dim = emb.shape[1]
    C = w1.shape[1]

    # ---- host-side parameter packing (tiny; one resident DMA buffer) ----
    # TODO(synk): hoist this packing (and jit the whole block) outside the
    # per-step call if this runs inside a diffusion sampling loop.
    packed = jnp.stack([
        (b1 + b2).reshape(C).astype(jnp.float32),
        gamma.reshape(C).astype(jnp.float32),
        beta.reshape(C).astype(jnp.float32),
    ], axis=0)                                                     # [3, C]

    act_b = jnp.dtype(x.dtype).itemsize
    w_b = jnp.dtype(w1.dtype).itemsize
    # rows per sublane-packed vreg tile: f32 -> 8, bf16 -> 16, int8 -> 32
    pack_rows = max(8, 32 // act_b)

    # ---- batch tile sizing ----
    TB = max(pack_rows, min(int(tile_b), pl.cdiv(B, pack_rows) * pack_rows))
    TB = (TB // pack_rows) * pack_rows
    # Keep >= 2 grid steps when the batch permits, so the "parallel" batch axis
    # can split across v7x's two TensorCores (and halve per-step DMA).
    if B >= 2 * pack_rows:
        TB = min(TB, max(pack_rows, (B // 2 // pack_rows) * pack_rows))

    # Shrink TB until the pipelined VMEM footprint fits the budget (v7x: 64 MiB).
    def _vmem_est(tb):
        return (2 * tb * (in_dim + embed_dim) * act_b    # x/emb double-buffered
                + 2 * tb * C * act_b                     # output double-buffered
                + 2 * (in_dim + embed_dim) * C * w_b     # resident weights
                + 2 * 8 * C * 4                          # packed params
                + 6 * tb * C * 4)                        # live f32 temporaries
    while TB > pack_rows and _vmem_est(TB) > _VMEM_BUDGET:
        TB = max(pack_rows, (TB // 2 // pack_rows) * pack_rows)

    n_tiles = pl.cdiv(B, TB)
    B_pad = n_tiles * TB
    if B_pad != B:
        # Only the two skinny activation inputs get padded (and only when
        # B % TB != 0). Zero rows give var=0 -> rsqrt(GN_EPS) finite; they are
        # sliced away below.
        x = jnp.pad(x, ((0, B_pad - B), (0, 0)))
        emb = jnp.pad(emb, ((0, B_pad - B), (0, 0)))

    kernel = functools.partial(_diffusion_block_kernel,
                               use_gnorm=use_gnorm, num_groups=NUM_GROUPS)

    cost = pl.CostEstimate(
        flops=2 * B_pad * (in_dim + embed_dim) * C + 12 * B_pad * C,
        transcendentals=B_pad * C + B_pad * NUM_GROUPS,
        bytes_accessed=(act_b * B_pad * (in_dim + embed_dim)   # x, emb in
                        + act_b * B_pad * C                    # out
                        + w_b * (in_dim + embed_dim) * C       # weights
                        + 4 * 3 * C),                          # packed params
    )

    # Note: for perf at real configs keep out_dim a multiple of 128 (lane-dense
    # stores); weight/param BlockSpecs could also use pipeline_mode=pl.Buffered(1)
    # to drop their unused second buffer at very large C.
    out = pl.pallas_call(
        kernel,
        out_shape=jax.ShapeDtypeStruct((B_pad, C), x.dtype),
        grid=(n_tiles,),
        in_specs=[
            pl.BlockSpec((TB, in_dim), lambda i: (i, 0)),     # x: batch-tiled
            pl.BlockSpec((TB, embed_dim), lambda i: (i, 0)),  # emb: batch-tiled
            pl.BlockSpec((in_dim, C), lambda i: (0, 0)),      # W1: VMEM-resident
            pl.BlockSpec((embed_dim, C), lambda i: (0, 0)),   # W2: VMEM-resident
            pl.BlockSpec((3, C), lambda i: (0, 0)),           # bias/gamma/beta
        ],
        out_specs=pl.BlockSpec((TB, C), lambda i: (i, 0)),
        compiler_params=pltpu.CompilerParams(
            dimension_semantics=("parallel",),                # megacore-shardable
            vmem_limit_bytes=_VMEM_LIMIT),
        cost_estimate=cost,
    )(x, emb, w1, w2, packed)

    return out[:B]


def _reference(x, emb, params, *, use_gnorm=True):
    """Plain-JAX reference matching the PyTorch forward (full-precision matmuls)."""
    w1, b1, w2, b2, gamma, beta = params
    hp = jax.lax.Precision.HIGHEST
    h = (jnp.dot(x, w1, precision=hp) + b1.reshape(1, -1)
         + jnp.dot(emb, w2, precision=hp) + b2.reshape(1, -1))
    if use_gnorm:
        B, C = h.shape
        gs = C // NUM_GROUPS
        hg = h.reshape(B, NUM_GROUPS, gs)
        mean = hg.mean(axis=-1, keepdims=True)
        var = hg.var(axis=-1, keepdims=True)      # biased, matches PyTorch GN
        hg = (hg - mean) / jnp.sqrt(var + GN_EPS)
        h = hg.reshape(B, C) * gamma.reshape(1, -1) + beta.reshape(1, -1)
    return h * jax.nn.sigmoid(h)


if __name__ == "__main__":
    # Small shapes consistent with the module: x:[B, in_dim], emb:[B, embed_dim]
    B, in_dim, embed_dim, out_dim = 32, 32, 16, 128   # out_dim % 4 == 0 for GN(4)

    key = jax.random.PRNGKey(0)
    kx, ke, k1, k2, k3, k4 = jax.random.split(key, 6)

    x = jax.random.normal(kx, (B, in_dim), dtype=jnp.float32)
    emb = jax.random.normal(ke, (B, embed_dim), dtype=jnp.float32)

    # Deterministic synthetic parameters (not a checkpoint load).
    w1 = jax.random.normal(k1, (in_dim, out_dim), jnp.float32) * (1.0 / in_dim ** 0.5)
    b1 = jax.random.normal(k2, (out_dim,), jnp.float32) * 0.02
    w2 = jax.random.normal(k3, (embed_dim, out_dim), jnp.float32) * (1.0 / embed_dim ** 0.5)
    b2 = jax.random.normal(k4, (out_dim,), jnp.float32) * 0.02
    gamma = jnp.ones((out_dim,), jnp.float32)     # GroupNorm affine weight
    beta = jnp.zeros((out_dim,), jnp.float32)     # GroupNorm affine bias
    params = (w1, b1, w2, b2, gamma, beta)

    # tile_b=8 exercises a multi-step batch grid (4 tiles) even at demo size.
    out = diffusion_block(x, emb, params, use_gnorm=True, tile_b=8)
    out = jax.block_until_ready(out)

    ref = _reference(x, emb, params, use_gnorm=True)
    assert out.shape == (B, out_dim)
    err = float(jnp.max(jnp.abs(out - ref)))
    assert err < 1e-3, err

    print("KERNEL_OK")
</pallas_src>

<mosaic_0001>
module attributes {stable_mosaic.version = 11 : i64} {
  func.func @_diffusion_block_kernel(%arg0: i32, %arg1: memref<8x32xf32, #tpu.memory_space<vmem>>, %arg2: memref<8x16xf32, #tpu.memory_space<vmem>>, %arg3: memref<32x128xf32, #tpu.memory_space<vmem>>, %arg4: memref<16x128xf32, #tpu.memory_space<vmem>>, %arg5: memref<3x128xf32, #tpu.memory_space<vmem>>, %arg6: memref<8x128xf32, #tpu.memory_space<vmem>>) attributes {dimension_semantics = [#tpu.dimension_semantics<parallel>], iteration_bounds = array<i64: 4>, scalar_prefetch = 0 : i64, scratch_operands = 0 : i64, tpu.core_type = #tpu.core_type<tc>, window_params = [{transform_indices = @transform_0, window_bounds = array<i64: 8, 32>}, {transform_indices = @transform_1, window_bounds = array<i64: 8, 16>}, {pipeline_mode = #tpu.pipeline_mode<synchronous>, transform_indices = @transform_2, window_bounds = array<i64: 32, 128>}, {pipeline_mode = #tpu.pipeline_mode<synchronous>, transform_indices = @transform_3, window_bounds = array<i64: 16, 128>}, {pipeline_mode = #tpu.pipeline_mode<synchronous>, transform_indices = @transform_4, window_bounds = array<i64: 3, 128>}, {transform_indices = @transform_5, window_bounds = array<i64: 8, 128>}]} {
    %c0 = arith.constant 0 : index
    %c0_0 = arith.constant 0 : index
    %0 = vector.load %arg1[%c0, %c0_0] : memref<8x32xf32, #tpu.memory_space<vmem>>, vector<8x32xf32>
    %c0_1 = arith.constant 0 : index
    %c0_2 = arith.constant 0 : index
    %1 = vector.load %arg3[%c0_1, %c0_2] : memref<32x128xf32, #tpu.memory_space<vmem>>, vector<32x128xf32>
    %cst = arith.constant dense<0.000000e+00> : vector<8x128xf32>
    %2 = tpu.matmul %0, %1, %cst {dimension_numbers = #tpu.dot_dimension_numbers<[1], [0], [0], [1], [0, 0, 1, 1], [], []>} : vector<8x32xf32>, vector<32x128xf32>, vector<8x128xf32> -> vector<8x128xf32>
    %c0_3 = arith.constant 0 : index
    %c0_4 = arith.constant 0 : index
    %3 = vector.load %arg2[%c0_3, %c0_4] : memref<8x16xf32, #tpu.memory_space<vmem>>, vector<8x16xf32>
    %c0_5 = arith.constant 0 : index
    %c0_6 = arith.constant 0 : index
    %4 = vector.load %arg4[%c0_5, %c0_6] : memref<16x128xf32, #tpu.memory_space<vmem>>, vector<16x128xf32>
    %cst_7 = arith.constant dense<0.000000e+00> : vector<8x128xf32>
    %5 = tpu.matmul %3, %4, %cst_7 {dimension_numbers = #tpu.dot_dimension_numbers<[1], [0], [0], [1], [0, 0, 1, 1], [], []>} : vector<8x16xf32>, vector<16x128xf32>, vector<8x128xf32> -> vector<8x128xf32>
    %6 = arith.addf %2, %5 : vector<8x128xf32>
    %c0_8 = arith.constant 0 : index
    %c0_9 = arith.constant 0 : index
    %7 = vector.load %arg5[%c0_8, %c0_9] : memref<3x128xf32, #tpu.memory_space<vmem>>, vector<3x128xf32>
    %8 = vector.extract_strided_slice %7 {offsets = [0, 0], sizes = [1, 128], strides = [1, 1]} : vector<3x128xf32> to vector<1x128xf32>
    %9 = vector.broadcast %8 : vector<1x128xf32> to vector<8x128xf32>
    %10 = arith.addf %6, %9 : vector<8x128xf32>
    %11 = vector.extract_strided_slice %7 {offsets = [1, 0], sizes = [1, 128], strides = [1, 1]} : vector<3x128xf32> to vector<1x128xf32>
    %12 = vector.extract_strided_slice %7 {offsets = [2, 0], sizes = [1, 128], strides = [1, 1]} : vector<3x128xf32> to vector<1x128xf32>
    %13 = tpu.iota {dimensions = array<i32: 1>} : vector<8x128xi32>
    %cst_10 = arith.constant 0.000000e+00 : f32
    %14 = vector.broadcast %cst_10 : f32 to vector<8x128xf32>
    %cst_11 = arith.constant 0.000000e+00 : f32
    %15 = vector.broadcast %cst_11 : f32 to vector<8x128xf32>
    %c0_i32 = arith.constant 0 : i32
    %16 = vector.broadcast %c0_i32 : i32 to vector<8x128xi32>
    %17 = arith.cmpi sge, %13, %16 : vector<8x128xi32>
    %c32_i32 = arith.constant 32 : i32
    %18 = vector.broadcast %c32_i32 : i32 to vector<8x128xi32>
    %19 = arith.cmpi slt, %13, %18 : vector<8x128xi32>
    %20 = arith.andi %17, %19 : vector<8x128xi1>
    %cst_12 = arith.constant 0.000000e+00 : f32
    %21 = vector.broadcast %cst_12 : f32 to vector<8x128xf32>
    %22 = arith.select %20, %10, %21 : vector<8x128xi1>, vector<8x128xf32>
    %cst_13 = arith.constant dense<0.000000e+00> : vector<8xf32>
    %23 = vector.multi_reduction <add>, %22, %cst_13 [1] : vector<8x128xf32> to vector<8xf32>
    %24 = vector.shape_cast %23 : vector<8xf32> to vector<8x1xf32>
    %cst_14 = arith.constant 3.125000e-02 : f32
    %25 = vector.broadcast %cst_14 : f32 to vector<8x1xf32>
    %26 = arith.mulf %24, %25 : vector<8x1xf32>
    %27 = vector.broadcast %26 : vector<8x1xf32> to vector<8x128xf32>
    %28 = arith.subf %10, %27 : vector<8x128xf32>
    %cst_15 = arith.constant 0.000000e+00 : f32
    %29 = vector.broadcast %cst_15 : f32 to vector<8x128xf32>
    %30 = arith.select %20, %28, %29 : vector<8x128xi1>, vector<8x128xf32>
    %31 = arith.mulf %30, %30 : vector<8x128xf32>
    %cst_16 = arith.constant dense<0.000000e+00> : vector<8xf32>
    %32 = vector.multi_reduction <add>, %31, %cst_16 [1] : vector<8x128xf32> to vector<8xf32>
    %33 = vector.shape_cast %32 : vector<8xf32> to vector<8x1xf32>
    %cst_17 = arith.constant 3.125000e-02 : f32
    %34 = vector.broadcast %cst_17 : f32 to vector<8x1xf32>
    %35 = arith.mulf %33, %34 : vector<8x1xf32>
    %cst_18 = arith.constant 9.99999974E-6 : f32
    %36 = vector.broadcast %cst_18 : f32 to vector<8x1xf32>
    %37 = arith.addf %35, %36 : vector<8x1xf32>
    %38 = math.rsqrt %37 : vector<8x1xf32>
    %39 = vector.shape_cast %26 : vector<8x1xf32> to vector<8x1xf32>
    %40 = vector.broadcast %39 : vector<8x1xf32> to vector<8x128xf32>
    %41 = arith.select %20, %40, %14 : vector<8x128xi1>, vector<8x128xf32>
    %42 = vector.shape_cast %38 : vector<8x1xf32> to vector<8x1xf32>
    %43 = vector.broadcast %42 : vector<8x1xf32> to vector<8x128xf32>
    %44 = arith.select %20, %43, %15 : vector<8x128xi1>, vector<8x128xf32>
    %c32_i32_19 = arith.constant 32 : i32
    %45 = vector.broadcast %c32_i32_19 : i32 to vector<8x128xi32>
    %46 = arith.cmpi sge, %13, %45 : vector<8x128xi32>
    %c64_i32 = arith.constant 64 : i32
    %47 = vector.broadcast %c64_i32 : i32 to vector<8x128xi32>
    %48 = arith.cmpi slt, %13, %47 : vector<8x128xi32>
    %49 = arith.andi %46, %48 : vector<8x128xi1>
    %cst_20 = arith.constant 0.000000e+00 : f32
    %50 = vector.broadcast %cst_20 : f32 to vector<8x128xf32>
    %51 = arith.select %49, %10, %50 : vector<8x128xi1>, vector<8x128xf32>
    %cst_21 = arith.constant dense<0.000000e+00> : vector<8xf32>
    %52 = vector.multi_reduction <add>, %51, %cst_21 [1] : vector<8x128xf32> to vector<8xf32>
    %53 = vector.shape_cast %52 : vector<8xf32> to vector<8x1xf32>
    %cst_22 = arith.constant 3.125000e-02 : f32
    %54 = vector.broadcast %cst_22 : f32 to vector<8x1xf32>
    %55 = arith.mulf %53, %54 : vector<8x1xf32>
    %56 = vector.broadcast %55 : vector<8x1xf32> to vector<8x128xf32>
    %57 = arith.subf %10, %56 : vector<8x128xf32>
    %cst_23 = arith.constant 0.000000e+00 : f32
    %58 = vector.broadcast %cst_23 : f32 to vector<8x128xf32>
    %59 = arith.select %49, %57, %58 : vector<8x128xi1>, vector<8x128xf32>
    %60 = arith.mulf %59, %59 : vector<8x128xf32>
    %cst_24 = arith.constant dense<0.000000e+00> : vector<8xf32>
    %61 = vector.multi_reduction <add>, %60, %cst_24 [1] : vector<8x128xf32> to vector<8xf32>
    %62 = vector.shape_cast %61 : vector<8xf32> to vector<8x1xf32>
    %cst_25 = arith.constant 3.125000e-02 : f32
    %63 = vector.broadcast %cst_25 : f32 to vector<8x1xf32>
    %64 = arith.mulf %62, %63 : vector<8x1xf32>
    %cst_26 = arith.constant 9.99999974E-6 : f32
    %65 = vector.broadcast %cst_26 : f32 to vector<8x1xf32>
    %66 = arith.addf %64, %65 : vector<8x1xf32>
    %67 = math.rsqrt %66 : vector<8x1xf32>
    %68 = vector.shape_cast %55 : vector<8x1xf32> to vector<8x1xf32>
    %69 = vector.broadcast %68 : vector<8x1xf32> to vector<8x128xf32>
    %70 = arith.select %49, %69, %41 : vector<8x128xi1>, vector<8x128xf32>
    %71 = vector.shape_cast %67 : vector<8x1xf32> to vector<8x1xf32>
    %72 = vector.broadcast %71 : vector<8x1xf32> to vector<8x128xf32>
    %73 = arith.select %49, %72, %44 : vector<8x128xi1>, vector<8x128xf32>
    %c64_i32_27 = arith.constant 64 : i32
    %74 = vector.broadcast %c64_i32_27 : i32 to vector<8x128xi32>
    %75 = arith.cmpi sge, %13, %74 : vector<8x128xi32>
    %c96_i32 = arith.constant 96 : i32
    %76 = vector.broadcast %c96_i32 : i32 to vector<8x128xi32>
    %77 = arith.cmpi slt, %13, %76 : vector<8x128xi32>
    %78 = arith.andi %75, %77 : vector<8x128xi1>
    %cst_28 = arith.constant 0.000000e+00 : f32
    %79 = vector.broadcast %cst_28 : f32 to vector<8x128xf32>
    %80 = arith.select %78, %10, %79 : vector<8x128xi1>, vector<8x128xf32>
    %cst_29 = arith.constant dense<0.000000e+00> : vector<8xf32>
    %81 = vector.multi_reduction <add>, %80, %cst_29 [1] : vector<8x128xf32> to vector<8xf32>
    %82 = vector.shape_cast %81 : vector<8xf32> to vector<8x1xf32>
    %cst_30 = arith.constant 3.125000e-02 : f32
    %83 = vector.broadcast %cst_30 : f32 to vector<8x1xf32>
    %84 = arith.mulf %82, %83 : vector<8x1xf32>
    %85 = vector.broadcast %84 : vector<8x1xf32> to vector<8x128xf32>
    %86 = arith.subf %10, %85 : vector<8x128xf32>
    %cst_31 = arith.constant 0.000000e+00 : f32
    %87 = vector.broadcast %cst_31 : f32 to vector<8x128xf32>
    %88 = arith.select %78, %86, %87 : vector<8x128xi1>, vector<8x128xf32>
    %89 = arith.mulf %88, %88 : vector<8x128xf32>
    %cst_32 = arith.constant dense<0.000000e+00> : vector<8xf32>
    %90 = vector.multi_reduction <add>, %89, %cst_32 [1] : vector<8x128xf32> to vector<8xf32>
    %91 = vector.shape_cast %90 : vector<8xf32> to vector<8x1xf32>
    %cst_33 = arith.constant 3.125000e-02 : f32
    %92 = vector.broadcast %cst_33 : f32 to vector<8x1xf32>
    %93 = arith.mulf %91, %92 : vector<8x1xf32>
    %cst_34 = arith.constant 9.99999974E-6 : f32
    %94 = vector.broadcast %cst_34 : f32 to vector<8x1xf32>
    %95 = arith.addf %93, %94 : vector<8x1xf32>
    %96 = math.rsqrt %95 : vector<8x1xf32>
    %97 = vector.shape_cast %84 : vector<8x1xf32> to vector<8x1xf32>
    %98 = vector.broadcast %97 : vector<8x1xf32> to vector<8x128xf32>
    %99 = arith.select %78, %98, %70 : vector<8x128xi1>, vector<8x128xf32>
    %100 = vector.shape_cast %96 : vector<8x1xf32> to vector<8x1xf32>
    %101 = vector.broadcast %100 : vector<8x1xf32> to vector<8x128xf32>
    %102 = arith.select %78, %101, %73 : vector<8x128xi1>, vector<8x128xf32>
    %c96_i32_35 = arith.constant 96 : i32
    %103 = vector.broadcast %c96_i32_35 : i32 to vector<8x128xi32>
    %104 = arith.cmpi sge, %13, %103 : vector<8x128xi32>
    %c128_i32 = arith.constant 128 : i32
    %105 = vector.broadcast %c128_i32 : i32 to vector<8x128xi32>
    %106 = arith.cmpi slt, %13, %105 : vector<8x128xi32>
    %107 = arith.andi %104, %106 : vector<8x128xi1>
    %cst_36 = arith.constant 0.000000e+00 : f32
    %108 = vector.broadcast %cst_36 : f32 to vector<8x128xf32>
    %109 = arith.select %107, %10, %108 : vector<8x128xi1>, vector<8x128xf32>
    %cst_37 = arith.constant dense<0.000000e+00> : vector<8xf32>
    %110 = vector.multi_reduction <add>, %109, %cst_37 [1] : vector<8x128xf32> to vector<8xf32>
    %111 = vector.shape_cast %110 : vector<8xf32> to vector<8x1xf32>
    %cst_38 = arith.constant 3.125000e-02 : f32
    %112 = vector.broadcast %cst_38 : f32 to vector<8x1xf32>
    %113 = arith.mulf %111, %112 : vector<8x1xf32>
    %114 = vector.broadcast %113 : vector<8x1xf32> to vector<8x128xf32>
    %115 = arith.subf %10, %114 : vector<8x128xf32>
    %cst_39 = arith.constant 0.000000e+00 : f32
    %116 = vector.broadcast %cst_39 : f32 to vector<8x128xf32>
    %117 = arith.select %107, %115, %116 : vector<8x128xi1>, vector<8x128xf32>
    %118 = arith.mulf %117, %117 : vector<8x128xf32>
    %cst_40 = arith.constant dense<0.000000e+00> : vector<8xf32>
    %119 = vector.multi_reduction <add>, %118, %cst_40 [1] : vector<8x128xf32> to vector<8xf32>
    %120 = vector.shape_cast %119 : vector<8xf32> to vector<8x1xf32>
    %cst_41 = arith.constant 3.125000e-02 : f32
    %121 = vector.broadcast %cst_41 : f32 to vector<8x1xf32>
    %122 = arith.mulf %120, %121 : vector<8x1xf32>
    %cst_42 = arith.constant 9.99999974E-6 : f32
    %123 = vector.broadcast %cst_42 : f32 to vector<8x1xf32>
    %124 = arith.addf %122, %123 : vector<8x1xf32>
    %125 = math.rsqrt %124 : vector<8x1xf32>
    %126 = vector.shape_cast %113 : vector<8x1xf32> to vector<8x1xf32>
    %127 = vector.broadcast %126 : vector<8x1xf32> to vector<8x128xf32>
    %128 = arith.select %107, %127, %99 : vector<8x128xi1>, vector<8x128xf32>
    %129 = vector.shape_cast %125 : vector<8x1xf32> to vector<8x1xf32>
    %130 = vector.broadcast %129 : vector<8x1xf32> to vector<8x128xf32>
    %131 = arith.select %107, %130, %102 : vector<8x128xi1>, vector<8x128xf32>
    %132 = arith.subf %10, %128 : vector<8x128xf32>
    %133 = vector.broadcast %11 : vector<1x128xf32> to vector<8x128xf32>
    %134 = arith.mulf %131, %133 : vector<8x128xf32>
    %135 = arith.mulf %132, %134 : vector<8x128xf32>
    %136 = vector.broadcast %12 : vector<1x128xf32> to vector<8x128xf32>
    %137 = arith.addf %135, %136 : vector<8x128xf32>
    %138 = arith.negf %137 : vector<8x128xf32>
    %139 = math.exp %138 : vector<8x128xf32>
    %cst_43 = arith.constant 1.000000e+00 : f32
    %140 = vector.broadcast %cst_43 : f32 to vector<8x128xf32>
    %141 = arith.addf %140, %139 : vector<8x128xf32>
    %142 = arith.divf %140, %141 : vector<8x128xf32>
    %143 = arith.mulf %137, %142 : vector<8x128xf32>
    %c0_44 = arith.constant 0 : index
    %c0_45 = arith.constant 0 : index
    %144 = vector.load %arg6[%c0_44, %c0_45] : memref<8x128xf32, #tpu.memory_space<vmem>>, vector<8x128xf32>
    tpu.vector_store %arg6[%c0_44, %c0_45], %143 {strides = array<i32>} : memref<8x128xf32, #tpu.memory_space<vmem>>, vector<8x128xf32>,
    return
  }
  func.func @transform_0(%arg0: i32) -> (i32, i32) {
    %c0_i32 = arith.constant 0 : i32
    %c0_i32_0 = arith.constant 0 : i32
    return %arg0, %c0_i32 : i32, i32
  }
  func.func @transform_1(%arg0: i32) -> (i32, i32) {
    %c0_i32 = arith.constant 0 : i32
    %c0_i32_0 = arith.constant 0 : i32
    return %arg0, %c0_i32 : i32, i32
  }
  func.func @transform_2(%arg0: i32) -> (i32, i32) {
    %c0_i32 = arith.constant 0 : i32
    %c0_i32_0 = arith.constant 0 : i32
    %c0_i32_1 = arith.constant 0 : i32
    return %c0_i32, %c0_i32_0 : i32, i32
  }
  func.func @transform_3(%arg0: i32) -> (i32, i32) {
    %c0_i32 = arith.constant 0 : i32
    %c0_i32_0 = arith.constant 0 : i32
    %c0_i32_1 = arith.constant 0 : i32
    return %c0_i32, %c0_i32_0 : i32, i32
  }
  func.func @transform_4(%arg0: i32) -> (i32, i32) {
    %c0_i32 = arith.constant 0 : i32
    %c0_i32_0 = arith.constant 0 : i32
    %c0_i32_1 = arith.constant 0 : i32
    return %c0_i32, %c0_i32_0 : i32, i32
  }
  func.func @transform_5(%arg0: i32) -> (i32, i32) {
    %c0_i32 = arith.constant 0 : i32
    %c0_i32_0 = arith.constant 0 : i32
    return %arg0, %c0_i32 : i32, i32
  }
}

</mosaic_0001>

<llo_original>
// kernel: tpu_custom_call.1
$region0: #{tpu_custom_call.1}
  #allocation0 [shape = 'u32[]', space=smem, size = 0x4, offset = 0x4, fixed_abs, tag = 'smem constant byte address 0x4 - core index']
  #allocation1 [shape = 'u32[144,128]{1,0:T(1,128)}', space=vmem, size = 0x12000, scoped, tag = 'internal scratch']
  %s0 = inlined_call_operand.vmem [shape: f32[32,32], index: 0, kind: input, shape index: {}]
  %s1 = inlined_call_operand.vmem [shape: f32[32,16], index: 1, kind: input, shape index: {}]
  %s2 = inlined_call_operand.hbm [shape: f32[32,128], index: 2, kind: input, shape index: {}]
  %s3 = inlined_call_operand.vmem [shape: f32[16,128], index: 3, kind: input, shape index: {}]
  %s4 = inlined_call_operand.vmem [shape: f32[3,128], index: 4, kind: input, shape index: {}]
  %s5 = inlined_call_operand.hbm [shape: f32[32,128], index: 5, kind: output, shape index: {}]
  %s6 = sld [smem:[#allocation0]]
  $region57: #{tpu_custom_call.1} parent=0
    _
  %s8 = ssub.s32 1, %s6
  %s9 = scalar_select 0, %s8, %s6
  $region1: #{tpu_custom_call.1} parent=0
    #allocation2 [shape = 'u8[16384]{0}', space=vmem, size = 0x4000, scoped, tag = 'input window, operand 2, single buffered']
    #allocation3 [shape = 's32[2]{0}', space=sflag, size = 0x8, scoped, tag = 'scoped memory for tpu_custom_call.1']
    #allocation4 [shape = 's32[2]{0}', space=sflag, size = 0x8, scoped, tag = 'scoped memory for tpu_custom_call.1']
    #allocation5 [shape = 'u8[8192]{0}', space=vmem, size = 0x2000, scoped, tag = 'output window, operand 0']
    %10 = vsyncpa [#allocation3], 0
    %11 = vsyncpa [#allocation4], 0
    %s12 = scalar_lea.sflag [#allocation4], 1
    %13 = vsyncpa %s12, 0
    loop: start=0, step=1, limit=6
    $region2: #{tpu_custom_call.1} parent=1 // loop_pre_header
      _
    $region3: #{tpu_custom_call.1} parent=1 // loop_header
      %s15 = sphi 0, %s19
      %p16 = scmp.ge.s32.totalorder %s15, 6
      %s25 = sphi 0, %s27
      %s28 = sphi 0, %s25
      %s29 = sphi 0, %s28
      %s45 = sphi 0, %s29
      %s51 = sphi 0, %s53
      %s54 = sphi 0, %s51
      %s55 = sphi 0, %s54
      %s71 = sphi 0, %s55
      %s75 = sphi 0, %s75
      %s77 = sphi 0, %s75
      %s78 = sphi 0, %s77
      %s92 = sphi 0, %s78
      %s96 = sphi 0, %s96
      %s98 = sphi 0, %s96
      %s99 = sphi 0, %s98
      %s113 = sphi 0, %s99
      %s117 = sphi 0, %s117
      %s119 = sphi 0, %s117
      %s120 = sphi 0, %s119
      %s134 = sphi 0, %s120
      %s140 = sphi 0, %s142
      %s143 = sphi 0, %s140
      %s144 = sphi 0, %s143
      %s160 = sphi 0, %s144
    $region4: #{tpu_custom_call.1} parent=1 // loop_header_branch
      %18 = sbr.rel (%p16) target = $region8
    $region5: #{tpu_custom_call.1} parent=1 // loop_body
      %s20 = ssub.s32 %s15, 1
      %s21 = ssub.s32 %s15, 2
      %s22 = sadd.s32 %s15, 1
      %s23 = ssub.s32 %s15, %s22
      %p24 = scmp.eq.s32.totalorder %s23, 0
      %s26 = sadd.s32 %s25, 1
      %s27 = scalar_select %p24, %s25, %s26
      %p30 = pneg %p24
      %p31 = scmp.eq.s32.totalorder %s15, 3
      %p32 = por %p30, %p31
      %p33 = scmp.ne.s32.totalorder %s25, %s28
      %p34 = scmp.eq.s32.totalorder %s15, 0
      %p35 = por %p33, %p34
      %p36 = scmp.ne.s32.totalorder %s25, %s28
      %p37 = scmp.eq.s32.totalorder %s20, 3
      %p38 = por %p36, %p37
      %p39 = scmp.ne.s32.totalorder %s28, %s29
      %p40 = scmp.eq.s32.totalorder %s20, 0
      %p41 = por %p39, %p40
      %p42 = scmp.ne.s32.totalorder %s28, %s29
      %p43 = scmp.eq.s32.totalorder %s21, 3
      %p44 = por %p42, %p43
      %p46 = scmp.ne.s32.totalorder %s29, %s45
      %p47 = scmp.eq.s32.totalorder %s21, 0
      %p48 = por %p46, %p47
      %s49 = ssub.s32 %s15, %s22
      %p50 = scmp.eq.s32.totalorder %s49, 0
      %s52 = sadd.s32 %s51, 1
      %s53 = scalar_select %p50, %s51, %s52
      %p56 = pneg %p50
      %p57 = scmp.eq.s32.totalorder %s15, 3
      %p58 = por %p56, %p57
      %p59 = scmp.ne.s32.totalorder %s51, %s54
      %p60 = scmp.eq.s32.totalorder %s15, 0
      %p61 = por %p59, %p60
      %p62 = scmp.ne.s32.totalorder %s51, %s54
      %p63 = scmp.eq.s32.totalorder %s20, 3
      %p64 = por %p62, %p63
      %p65 = scmp.ne.s32.totalorder %s54, %s55
      %p66 = scmp.eq.s32.totalorder %s20, 0
      %p67 = por %p65, %p66
      %p68 = scmp.ne.s32.totalorder %s54, %s55
      %p69 = scmp.eq.s32.totalorder %s21, 3
      %p70 = por %p68, %p69
      %p72 = scmp.ne.s32.totalorder %s55, %s71
      %p73 = scmp.eq.s32.totalorder %s21, 0
      %p74 = por %p72, %p73
      %s76 = sadd.s32 %s75, 1
      %p79 = scmp.eq.s32.totalorder %s15, 3
      %p80 = scmp.ne.s32.totalorder %s75, %s77
      %p81 = scmp.eq.s32.totalorder %s15, 0
      %p82 = por %p80, %p81
      %p83 = scmp.ne.s32.totalorder %s75, %s77
      %p84 = scmp.eq.s32.totalorder %s20, 3
      %p85 = por %p83, %p84
      %p86 = scmp.ne.s32.totalorder %s77, %s78
      %p87 = scmp.eq.s32.totalorder %s20, 0
      %p88 = por %p86, %p87
      %p89 = scmp.ne.s32.totalorder %s77, %s78
      %p90 = scmp.eq.s32.totalorder %s21, 3
      %p91 = por %p89, %p90
      %p93 = scmp.ne.s32.totalorder %s78, %s92
      %p94 = scmp.eq.s32.totalorder %s21, 0
      %p95 = por %p93, %p94
      %s97 = sadd.s32 %s96, 1
      %p100 = scmp.eq.s32.totalorder %s15, 3
      %p101 = scmp.ne.s32.totalorder %s96, %s98
      %p102 = scmp.eq.s32.totalorder %s15, 0
      %p103 = por %p101, %p102
      %p104 = scmp.ne.s32.totalorder %s96, %s98
      %p105 = scmp.eq.s32.totalorder %s20, 3
      %p106 = por %p104, %p105
      %p107 = scmp.ne.s32.totalorder %s98, %s99
      %p108 = scmp.eq.s32.totalorder %s20, 0
      %p109 = por %p107, %p108
      %p110 = scmp.ne.s32.totalorder %s98, %s99
      %p111 = scmp.eq.s32.totalorder %s21, 3
      %p112 = por %p110, %p111
      %p114 = scmp.ne.s32.totalorder %s99, %s113
      %p115 = scmp.eq.s32.totalorder %s21, 0
      %p116 = por %p114, %p115
      %s118 = sadd.s32 %s117, 1
      %p121 = scmp.eq.s32.totalorder %s15, 3
      %p122 = scmp.ne.s32.totalorder %s117, %s119
      %p123 = scmp.eq.s32.totalorder %s15, 0
      %p124 = por %p122, %p123
      %p125 = scmp.ne.s32.totalorder %s117, %s119
      %p126 = scmp.eq.s32.totalorder %s20, 3
      %p127 = por %p125, %p126
      %p128 = scmp.ne.s32.totalorder %s119, %s120
      %p129 = scmp.eq.s32.totalorder %s20, 0
      %p130 = por %p128, %p129
      %p131 = scmp.ne.s32.totalorder %s119, %s120
      %p132 = scmp.eq.s32.totalorder %s21, 3
      %p133 = por %p131, %p132
      %p135 = scmp.ne.s32.totalorder %s120, %s134
      %p136 = scmp.eq.s32.totalorder %s21, 0
      %p137 = por %p135, %p136
      %s138 = ssub.s32 %s15, %s22
      %p139 = scmp.eq.s32.totalorder %s138, 0
      %s141 = sadd.s32 %s140, 1
      %s142 = scalar_select %p139, %s140, %s141
      %p145 = pneg %p139
      %p146 = scmp.eq.s32.totalorder %s15, 3
      %p147 = por %p145, %p146
      %p148 = scmp.ne.s32.totalorder %s140, %s143
      %p149 = scmp.eq.s32.totalorder %s15, 0
      %p150 = por %p148, %p149
      %p151 = scmp.ne.s32.totalorder %s140, %s143
      %p152 = scmp.eq.s32.totalorder %s20, 3
      %p153 = por %p151, %p152
      %p154 = scmp.ne.s32.totalorder %s143, %s144
      %p155 = scmp.eq.s32.totalorder %s20, 0
      %p156 = por %p154, %p155
      %p157 = scmp.ne.s32.totalorder %s143, %s144
      %p158 = scmp.eq.s32.totalorder %s21, 3
      %p159 = por %p157, %p158
      %p161 = scmp.ne.s32.totalorder %s144, %s160
      %p162 = scmp.eq.s32.totalorder %s21, 0
      %p163 = por %p161, %p162
      %p164 = scmp.le.s32.totalorder 1, %s15
      %p165 = scmp.lt.s32.totalorder %s15, 5
      %p166 = pnand %p164, %p165
      %p167 = pneg %p166
      // Predicated region
      $region9: #{tpu_custom_call.1} parent=5 // pred_check
        _
      $region10: #{tpu_custom_call.1} parent=5 // pred_check_branch
        %169 = sbr.rel (%p166) target = $region12
      $region11: #{tpu_custom_call.1} parent=5 // pred_region
        %s170 = ssub.s32 %s15, 1
        // Predicated region
        $region13: #{tpu_custom_call.1} parent=11 // pred_check
          %p171 = pneg %p88
        $region14: #{tpu_custom_call.1} parent=11 // pred_check_branch
          %173 = sbr.rel (%p171) target = $region16
        $region15: #{tpu_custom_call.1} parent=11 // pred_region
          %s175 = ssub.s32 512, 512
          %176 = vsyncadd [#allocation3], %s175
          %s177 = sshll.u32 [#allocation2], 4
          %s178 = int_to_ptr.vmem [resolvable:$true] %s177
          %183 = dma.hbm_to_vmem [thread:$0]  %s2, 512, %s178, [#allocation3], 128, 128, 8
        $region16: #{tpu_custom_call.1} parent=11 // pred_fallthru
          _
        // Predicated region
        $region17: #{tpu_custom_call.1} parent=11 // pred_check
          %p184 = pneg %p109
        $region18: #{tpu_custom_call.1} parent=11 // pred_check_branch
          %186 = sbr.rel (%p184) target = $region20
        $region19: #{tpu_custom_call.1} parent=11 // pred_region
          _
        $region20: #{tpu_custom_call.1} parent=11 // pred_fallthru
          _
        // Predicated region
        $region21: #{tpu_custom_call.1} parent=11 // pred_check
          %p187 = pneg %p130
        $region22: #{tpu_custom_call.1} parent=11 // pred_check_branch
          %189 = sbr.rel (%p187) target = $region24
        $region23: #{tpu_custom_call.1} parent=11 // pred_region
          _
        $region24: #{tpu_custom_call.1} parent=11 // pred_fallthru
          _
      $region12: #{tpu_custom_call.1} parent=5 // pred_fallthru
        _
      %p190 = scmp.lt.s32.totalorder %s15, 4
      // Predicated region
      $region25: #{tpu_custom_call.1} parent=5 // pred_check
        %p191 = pneg %p190
      $region26: #{tpu_custom_call.1} parent=5 // pred_check_branch
        %193 = sbr.rel (%p191) target = $region28
      $region27: #{tpu_custom_call.1} parent=5 // pred_region
        // Predicated region
        $region29: #{tpu_custom_call.1} parent=27 // pred_check
          %p194 = pneg %p35
        $region30: #{tpu_custom_call.1} parent=27 // pred_check_branch
          %196 = sbr.rel (%p194) target = $region32
        $region31: #{tpu_custom_call.1} parent=27 // pred_region
          %p197 = scmp.lt.s32.totalorder %s15, 3
          %s198 = scalar_select %p197, %s15, 3
          %s199 = smul.addr %s198, 8
          %s200 = scalar_lea.vmem %s0, %s199
        $region32: #{tpu_custom_call.1} parent=27 // pred_fallthru
          _
        // Predicated region
        $region33: #{tpu_custom_call.1} parent=27 // pred_check
          %p201 = pneg %p61
        $region34: #{tpu_custom_call.1} parent=27 // pred_check_branch
          %203 = sbr.rel (%p201) target = $region36
        $region35: #{tpu_custom_call.1} parent=27 // pred_region
          %p204 = scmp.lt.s32.totalorder %s15, 3
          %s205 = scalar_select %p204, %s15, 3
          %s206 = smul.addr %s205, 8
          %s207 = scalar_lea.vmem %s1, %s206
        $region36: #{tpu_custom_call.1} parent=27 // pred_fallthru
          _
      $region28: #{tpu_custom_call.1} parent=5 // pred_fallthru
        _
      %p208 = scmp.le.s32.totalorder 1, %s15
      %p209 = scmp.lt.s32.totalorder %s15, 5
      %p210 = pnand %p208, %p209
      %p211 = pneg %p210
      // Predicated region
      $region37: #{tpu_custom_call.1} parent=5 // pred_check
        _
      $region38: #{tpu_custom_call.1} parent=5 // pred_check_branch
        %213 = sbr.rel (%p210) target = $region40
      $region39: #{tpu_custom_call.1} parent=5 // pred_region
        %s214 = ssub.s32 %s15, 1
        // Predicated region
        $region41: #{tpu_custom_call.1} parent=39 // pred_check
          %p215 = pneg %p88
        $region42: #{tpu_custom_call.1} parent=39 // pred_check_branch
          %217 = sbr.rel (%p215) target = $region44
        $region43: #{tpu_custom_call.1} parent=39 // pred_region
          %218 = dma.done [#allocation3], 512
        $region44: #{tpu_custom_call.1} parent=39 // pred_fallthru
          _
        %p219 = scmp.lt.s32.totalorder %s20, 3
        %s220 = scalar_select %p219, %s20, 3
        %s221 = smul.addr %s220, 8
        %s222 = scalar_lea.vmem %s0, %s221
        %p223 = pneg %p41
        %p224 = pneg %p38
        %p225 = scmp.lt.s32.totalorder %s20, 3
        %s226 = scalar_select %p225, %s20, 3
        %s227 = smul.addr %s226, 8
        %s228 = scalar_lea.vmem %s1, %s227
        %p229 = pneg %p67
        %p230 = pneg %p64
        %p231 = pneg %p88
        %p232 = pneg %p85
        %p233 = pneg %p109
        %p234 = pneg %p106
        %p235 = pneg %p130
        %p236 = pneg %p127
        %p237 = pneg %p156
        %p238 = pneg %p153
        %s239 = sand.u32 %s143, 1
        %s240 = scalar_lea.sflag [#allocation4], %s239
        %s241 = sand.u32 %s143, 1
        %s242 = smul.addr %s241, 8
        %s243 = scalar_lea.vmem [#allocation5], %s242
        %p244 = scmp.lt.s32.totalorder %s20, 3
        %s245 = scalar_select %p244, %s20, 3
        %s246 = smul.addr %s245, 8
        %s247 = scalar_lea.vmem %s0, %s246
        %p248 = scmp.lt.s32.totalorder %s20, 3
        %s249 = scalar_select %p248, %s20, 3
        %s250 = smul.addr %s249, 8
        %s251 = scalar_lea.vmem %s1, %s250
        %v252 = vld [vmem:[%s247] sm:$0xff]
        %v253 = vld [vmem:[#allocation2] sm:$0xff]
        %v254 = vld [vmem:[#allocation2 + $0x8] sm:$0xff]
        %v255 = vld [vmem:[#allocation2 + $0x10] sm:$0xff]
        %v256 = vld [vmem:[#allocation2 + $0x18] sm:$0xff]
        %v257 = vld [vmem:[%s251] sm:$0xff]
        %v258 = vld [vmem:[%s3] sm:$0xff]
        %v259 = vld [vmem:[%s3 + $0x8] sm:$0xff]
        %vm260 = vcmask 130048
        %v262 = vsel %vm260, %v257, 0
        %264 = vmatprep.subr.mxu0 0.0
        %265 = vmatpush1.msra.mxu0 %v258
        %266 = vmatprep.subr.mxu0 0.0
        %267 = vmatpush1.msra.mxu0 %v259
        %268 = vmatprep.subr.mxu0 0.0
        %269 = vmatpush1.msra.mxu0 0.0
        %270 = vmatprep.subr.mxu0 0.0
        %271 = vmatpush1.msra.mxu0 0.0
        %272 = vmatprep.subr.mxu0 0.0
        %273 = vmatpush1.msra.mxu0 0.0
        %274 = vmatprep.subr.mxu0 0.0
        %275 = vmatpush1.msra.mxu0 0.0
        %276 = vmatprep.subr.mxu0 0.0
        %277 = vmatpush1.msra.mxu0 0.0
        %278 = vmatprep.subr.mxu0 0.0
        %279 = vmatpush1.msra.mxu0 0.0
        %280 = vmatprep.subr.mxu0 0.0
        %281 = vmatpush1.msra.mxu0 0.0
        %282 = vmatprep.subr.mxu0 0.0
        %283 = vmatpush1.msra.mxu0 0.0
        %284 = vmatprep.subr.mxu0 0.0
        %285 = vmatpush1.msra.mxu0 0.0
        %286 = vmatprep.subr.mxu0 0.0
        %287 = vmatpush1.msra.mxu0 0.0
        %288 = vmatprep.subr.mxu0 0.0
        %289 = vmatpush1.msra.mxu0 0.0
        %290 = vmatprep.subr.mxu0 0.0
        %291 = vmatpush1.msra.mxu0 0.0
        %292 = vmatprep.subr.mxu0 0.0
        %293 = vmatpush1.msra.mxu0 0.0
        %294 = vmatprep.subr.mxu0 0.0
        %295 = vmatpush1.msra.mxu0 0.0
        %296 = vmatprep.subr.mxu0 0.0
        %297 = vmatpush1.msra.mxu0 0.0
        %298 = vmatprep.subr.mxu0 0.0
        %299 = vmatpush1.msra.mxu0 0.0
        %300 = vmatprep.subr.mxu0 0.0
        %301 = vmatpush1.msra.mxu0 0.0
        %302 = vmatprep.subr.mxu0 0.0
        %303 = vmatpush1.msra.mxu0 0.0
        %304 = vmatprep.subr.mxu0 0.0
        %305 = vmatpush1.msra.mxu0 0.0
        %306 = vmatprep.subr.mxu0 0.0
        %307 = vmatpush1.msra.mxu0 0.0
        %308 = vmatprep.subr.mxu0 0.0
        %309 = vmatpush1.msra.mxu0 0.0
        %310 = vmatprep.subr.mxu0 0.0
        %311 = vmatpush1.msra.mxu0 0.0
        %312 = vmatprep.subr.mxu0 0.0
        %313 = vmatpush1.msra.mxu0 0.0
        %314 = vmatprep.subr.mxu0 0.0
        %315 = vmatpush1.msra.mxu0 0.0
        %316 = vmatprep.subr.mxu0 0.0
        %317 = vmatpush1.msra.mxu0 0.0
        %318 = vmatprep.subr.mxu0 0.0
        %319 = vmatpush1.msra.mxu0 0.0
        %320 = vmatprep.subr.mxu0 0.0
        %321 = vmatpush1.msra.mxu0 0.0
        %322 = vmatprep.subr.mxu0 0.0
        %323 = vmatpush1.msra.mxu0 0.0
        %324 = vmatprep.subr.mxu0 0.0
        %325 = vmatpush1.msra.mxu0 0.0
        %326 = vmatprep.subr.mxu0 0.0
        %327 = vmatpush1.msra.mxu0 0.0
        %328 = vmatprep.mubr.f32.mxu0 0.0
        %329 = vmatmul.mubr.f32.gmra.mrb[0].mxu0 %v262
        %v330 = vpop.f32.mrb[0].mxu0
        %v331 = vadd.f32 0.0, %v330
        %v332 = vpop.f32.mrb[0].mxu0
        %333 = vdwg.mxu0
        %vm334 = vcmask 261120
        %v336 = vsel %vm334, %v252, 0
        %338 = vmatprep.subr.mxu0 0.0
        %339 = vmatpush1.msra.mxu0 %v253
        %340 = vmatprep.subr.mxu0 0.0
        %341 = vmatpush1.msra.mxu0 %v254
        %342 = vmatprep.subr.mxu0 0.0
        %343 = vmatpush1.msra.mxu0 %v255
        %344 = vmatprep.subr.mxu0 0.0
        %345 = vmatpush1.msra.mxu0 %v256
        %346 = vmatprep.subr.mxu0 0.0
        %347 = vmatpush1.msra.mxu0 0.0
        %348 = vmatprep.subr.mxu0 0.0
        %349 = vmatpush1.msra.mxu0 0.0
        %350 = vmatprep.subr.mxu0 0.0
        %351 = vmatpush1.msra.mxu0 0.0
        %352 = vmatprep.subr.mxu0 0.0
        %353 = vmatpush1.msra.mxu0 0.0
        %354 = vmatprep.subr.mxu0 0.0
        %355 = vmatpush1.msra.mxu0 0.0
        %356 = vmatprep.subr.mxu0 0.0
        %357 = vmatpush1.msra.mxu0 0.0
        %358 = vmatprep.subr.mxu0 0.0
        %359 = vmatpush1.msra.mxu0 0.0
        %360 = vmatprep.subr.mxu0 0.0
        %361 = vmatpush1.msra.mxu0 0.0
        %362 = vmatprep.subr.mxu0 0.0
        %363 = vmatpush1.msra.mxu0 0.0
        %364 = vmatprep.subr.mxu0 0.0
        %365 = vmatpush1.msra.mxu0 0.0
        %366 = vmatprep.subr.mxu0 0.0
        %367 = vmatpush1.msra.mxu0 0.0
        %368 = vmatprep.subr.mxu0 0.0
        %369 = vmatpush1.msra.mxu0 0.0
        %370 = vmatprep.subr.mxu0 0.0
        %371 = vmatpush1.msra.mxu0 0.0
        %372 = vmatprep.subr.mxu0 0.0
        %373 = vmatpush1.msra.mxu0 0.0
        %374 = vmatprep.subr.mxu0 0.0
        %375 = vmatpush1.msra.mxu0 0.0
        %376 = vmatprep.subr.mxu0 0.0
        %377 = vmatpush1.msra.mxu0 0.0
        %378 = vmatprep.subr.mxu0 0.0
        %379 = vmatpush1.msra.mxu0 0.0
        %380 = vmatprep.subr.mxu0 0.0
        %381 = vmatpush1.msra.mxu0 0.0
        %382 = vmatprep.subr.mxu0 0.0
        %383 = vmatpush1.msra.mxu0 0.0
        %384 = vmatprep.subr.mxu0 0.0
        %385 = vmatpush1.msra.mxu0 0.0
        %386 = vmatprep.subr.mxu0 0.0
        %387 = vmatpush1.msra.mxu0 0.0
        %388 = vmatprep.subr.mxu0 0.0
        %389 = vmatpush1.msra.mxu0 0.0
        %390 = vmatprep.subr.mxu0 0.0
        %391 = vmatpush1.msra.mxu0 0.0
        %392 = vmatprep.subr.mxu0 0.0
        %393 = vmatpush1.msra.mxu0 0.0
        %394 = vmatprep.subr.mxu0 0.0
        %395 = vmatpush1.msra.mxu0 0.0
        %396 = vmatprep.subr.mxu0 0.0
        %397 = vmatpush1.msra.mxu0 0.0
        %398 = vmatprep.subr.mxu0 0.0
        %399 = vmatpush1.msra.mxu0 0.0
        %400 = vmatprep.subr.mxu0 0.0
        %401 = vmatpush1.msra.mxu0 0.0
        %402 = vmatprep.mubr.f32.mxu0 0.0
        %403 = vmatmul.mubr.f32.gmra.mrb[0].mxu0 %v336
        %v404 = vpop.f32.mrb[0].mxu0
        %v405 = vadd.f32 %v331, %v404
        %v406 = vpop.f32.mrb[0].mxu0
        %407 = vdwg.mxu0
        %v408 = vld [vmem:[%s4] sm:$0x7]
        %v409 = vlaneseq
        %v410 = vshrl.u32 %v409, 7
        %v411 = vsub.s32 0, %v410
        %v412 = vrot.slane %v408, %v411
        %v413 = vadd.f32 %v405, %v412
        %v414 = vlaneseq
        %v415 = vand.u32 %v414, 127
        %vm416 = vcmp.ge.s32.totalorder %v415, 0
        %vm417 = vcmp.lt.s32.totalorder %v415, 32
        %vm418 = vmand %vm416, %vm417
        %v419 = vsel %vm418, %v413, 0.0
        %420 = vadd.xlane.f32.xlu0 %v419
        %v421 = vpop.xlane.xlu0 %420
        %v422 = vmul.f32 %v421, 0.03125
        %v423 = vsub.f32 %v413, %v422
        %v424 = vsel %vm418, %v423, 0.0
        %v425 = vmul.f32 %v424, %v424
        %426 = vadd.xlane.f32.xlu0 %v425
        %v427 = vpop.xlane.xlu0 %426
        %v428 = vmul.f32 %v427, 0.03125
        %v429 = vadd.f32 %v428, 1e-05
        %v430 = vrsqrt.pop %v429
        %v431 = vsel %vm418, %v422, 0.0
        %v432 = vsel %vm418, %v430, 0.0
        %vm433 = vcmp.ge.s32.totalorder %v415, 32
        %vm434 = vcmp.lt.s32.totalorder %v415, 64
        %vm435 = vmand %vm433, %vm434
        %v436 = vsel %vm435, %v413, 0.0
        %437 = vadd.xlane.f32.xlu0 %v436
        %v438 = vpop.xlane.xlu0 %437
        %v439 = vmul.f32 %v438, 0.03125
        %v440 = vsub.f32 %v413, %v439
        %v441 = vsel %vm435, %v440, 0.0
        %v442 = vmul.f32 %v441, %v441
        %443 = vadd.xlane.f32.xlu0 %v442
        %v444 = vpop.xlane.xlu0 %443
        %v445 = vmul.f32 %v444, 0.03125
        %v446 = vadd.f32 %v445, 1e-05
        %v447 = vrsqrt.pop %v446
        %v448 = vsel %vm435, %v439, %v431
        %v449 = vsel %vm435, %v447, %v432
        %vm450 = vcmp.ge.s32.totalorder %v415, 64
        %vm451 = vcmp.lt.s32.totalorder %v415, 96
        %vm452 = vmand %vm450, %vm451
        %v453 = vsel %vm452, %v413, 0.0
        %454 = vadd.xlane.f32.xlu0 %v453
        %v455 = vpop.xlane.xlu0 %454
        %v456 = vmul.f32 %v455, 0.03125
        %v457 = vsub.f32 %v413, %v456
        %v458 = vsel %vm452, %v457, 0.0
        %v459 = vmul.f32 %v458, %v458
        %460 = vadd.xlane.f32.xlu0 %v459
        %v461 = vpop.xlane.xlu0 %460
        %v462 = vmul.f32 %v461, 0.03125
        %v463 = vadd.f32 %v462, 1e-05
        %v464 = vrsqrt.pop %v463
        %v465 = vsel %vm452, %v456, %v448
        %v466 = vsel %vm452, %v464, %v449
        %vm467 = vcmp.ge.s32.totalorder %v415, 96
        %vm468 = vcmp.lt.s32.totalorder %v415, 128
        %vm469 = vmand %vm467, %vm468
        %v470 = vsel %vm469, %v413, 0.0
        %471 = vadd.xlane.f32.xlu0 %v470
        %v472 = vpop.xlane.xlu0 %471
        %v473 = vmul.f32 %v472, 0.03125
        %v474 = vsub.f32 %v413, %v473
        %v475 = vsel %vm469, %v474, 0.0
        %v476 = vmul.f32 %v475, %v475
        %477 = vadd.xlane.f32.xlu0 %v476
        %v478 = vpop.xlane.xlu0 %477
        %v479 = vmul.f32 %v478, 0.03125
        %v480 = vadd.f32 %v479, 1e-05
        %v481 = vrsqrt.pop %v480
        %v482 = vsel %vm469, %v473, %v465
        %v483 = vsel %vm469, %v481, %v466
        %v484 = vsub.f32 %v413, %v482
        %v485 = vlaneseq
        %v486 = vshrl.u32 %v485, 7
        %v487 = vsub.s32 1, %v486
        %v488 = vrot.slane %v408, %v487
        %v489 = vmul.f32 %v483, %v488
        %v490 = vmul.f32 %v484, %v489
        %v491 = vlaneseq
        %v492 = vshrl.u32 %v491, 7
        %v493 = vsub.s32 2, %v492
        %v494 = vrot.slane %v408, %v493
        %v495 = vadd.f32 %v490, %v494
        %v496 = vxor.u32 %v495, 2147483648
        %v497 = vmul.f32 %v496, 1.442695
        %v498 = vpow.pop %v497
        %v499 = vadd.f32 %v498, 1.0
        %v500 = vrcp.pop %v499
        %v501 = vmul.f32 1.0, %v500
        %v502 = vmul.f32 %v495, %v501
        %503 = vst [vmem:[%s243] sm:$0xff] %v502
        %s504 = sand.u32 %s143, 1
        %s505 = scalar_lea.sflag [#allocation4], %s504
        %s506 = sand.u32 %s143, 1
        %s507 = smul.addr %s506, 8
        %s508 = scalar_lea.vmem [#allocation5], %s507
        // Predicated region
        $region45: #{tpu_custom_call.1} parent=39 // pred_check
          %p509 = pneg %p153
        $region46: #{tpu_custom_call.1} parent=39 // pred_check_branch
          %511 = sbr.rel (%p509) target = $region48
        $region47: #{tpu_custom_call.1} parent=39 // pred_region
          %s513 = ssub.s32 128, 128
          %514 = vsyncadd %s505, %s513
          %s515 = smul.addr %s20, 128
          %s516 = scalar_lea.hbm %s5, %s515
          %s518 = sshll.u32 %s508, 4
          %s519 = int_to_ptr.vmem [resolvable:$true] %s518
          %521 = dma.vmem_to_hbm [thread:$0]  %s519, 128, %s516, %s505
        $region48: #{tpu_custom_call.1} parent=39 // pred_fallthru
          _
      $region40: #{tpu_custom_call.1} parent=5 // pred_fallthru
        _
      %p522 = scmp.le.s32.totalorder 2, %s15
      // Predicated region
      $region49: #{tpu_custom_call.1} parent=5 // pred_check
        %p523 = pneg %p522
      $region50: #{tpu_custom_call.1} parent=5 // pred_check_branch
        %525 = sbr.rel (%p523) target = $region52
      $region51: #{tpu_custom_call.1} parent=5 // pred_region
        %s526 = ssub.s32 %s15, 2
        // Predicated region
        $region53: #{tpu_custom_call.1} parent=51 // pred_check
          %p527 = pneg %p159
        $region54: #{tpu_custom_call.1} parent=51 // pred_check_branch
          %529 = sbr.rel (%p527) target = $region56
        $region55: #{tpu_custom_call.1} parent=51 // pred_region
          %s530 = sand.u32 %s144, 1
          %s531 = scalar_lea.sflag [#allocation4], %s530
          %s532 = sand.u32 %s144, 1
          %s533 = smul.addr %s532, 8
          %s534 = scalar_lea.vmem [#allocation5], %s533
          %535 = dma.done %s531, 128
        $region56: #{tpu_custom_call.1} parent=51 // pred_fallthru
          _
      $region52: #{tpu_custom_call.1} parent=5 // pred_fallthru
        _
    $region6: #{tpu_custom_call.1} parent=1 // loop_footer
      %s19 = sadd.s32 1, %s15
    $region7: #{tpu_custom_call.1} parent=1 // loop_footer_branch
      %14 = sbr.rel target = $region3
    $region8: #{tpu_custom_call.1} parent=1 // loop_exit
      _
    %536 = vsyncpa [#allocation3], 1
    %s537 = scalar_lea.sflag [#allocation3], 1
    %538 = vsyncpa %s537, 1
    %539 = vsyncpa [#allocation4], 1
    %s540 = scalar_lea.sflag [#allocation4], 1
    %541 = vsyncpa %s540, 1

</llo_original>
